<compile_context>
chip_gen: v5e
topology: v5e:2x2
jax: 0.10.0
libtpu: 0.0.40
codegen_flags: <defaults>
</compile_context>

<pallas_src>
import functools

import jax
import jax.numpy as jnp
from jax.experimental import pallas as pl
from jax.experimental.pallas import tpu as pltpu


def _round_up(v, m):
    return ((v + m - 1) // m) * m


def _pick_tiles(n):
    """Pick (Npad, tm, tk) so Npad % tm == Npad % tk == 0 and tiles are lane-aligned."""
    if n <= 256:
        npad = _round_up(n, 128)
        return npad, npad, npad
    # 256-row x 512-col A tiles; pad N to lcm(tm, tk) = 512.
    return _round_up(n, 512), 256, 512


def _graphconv_layer_kernel(a_ref, xk_ref, xi_ref, w_ref, b_ref, out_ref,
                            acc_ref, *, apply_relu):
    """One GraphConv layer, one (row-tile, k-tile) grid step.

    a_ref  : (tm, tk)        bf16   A[row_tile, col_tile]
    xk_ref : (tk, Cp)        bf16   X rows matching A's columns (aggregation)
    xi_ref : (tm, Cp)        bf16   X rows matching A's rows (root/self term)
    w_ref  : (2*Cp, Op)      bf16   stacked [[W_rel], [W_root]]
    b_ref  : (1, Op)         f32    bias (lin_rel bias only, per PyG GraphConv)
    out_ref: (tm, Op)               resident across the k axis
    acc_ref: (tm, Cp)        f32    aggregation accumulator (VMEM scratch)
    """
    k = pl.program_id(1)

    @pl.when(k == 0)
    def _():
        acc_ref[...] = jnp.zeros_like(acc_ref)

    # agg += A[:, k_tile] @ X[k_tile, :]   (bf16 MXU operands, f32 accumulate)
    acc_ref[...] += jnp.dot(a_ref[...], xk_ref[...],
                            preferred_element_type=jnp.float32)

    @pl.when(k == pl.num_programs(1) - 1)
    def _():
        agg = acc_ref[...].astype(xi_ref.dtype)                # bf16 for MXU
        feat = jnp.concatenate([agg, xi_ref[...]], axis=-1)    # (tm, 2*Cp)
        z = jnp.dot(feat, w_ref[...],
                    preferred_element_type=jnp.float32) + b_ref[...]
        if apply_relu:
            z = jnp.maximum(z, 0.0)                            # f32 epilogue
        out_ref[...] = z.astype(out_ref.dtype)


def _graphconv_layer(a, x, w_stacked, b, tm, tk, *, apply_relu, out_dtype):
    npad = a.shape[0]
    cin_p = x.shape[1]
    cout_p = w_stacked.shape[1]
    grid = (npad // tm, npad // tk)

    kernel = functools.partial(_graphconv_layer_kernel, apply_relu=apply_relu)

    out_bytes = jnp.dtype(out_dtype).itemsize
    flops = 2 * npad * npad * cin_p + 2 * npad * (2 * cin_p) * cout_p
    bytes_accessed = int(a.size * 2                      # A (bf16)
                         + x.size * 2 * (1 + grid[0])    # X streamed per row tile
                         + w_stacked.size * 2
                         + npad * cout_p * out_bytes)

    # Double-buffered tiles + scratch, with ~50% headroom, capped at 32 MiB.
    vmem_bytes = (2 * (tm * tk * 2 + tk * cin_p * 2 + tm * cin_p * 2
                       + 2 * cin_p * cout_p * 2 + tm * cout_p * out_bytes)
                  + tm * cin_p * 4 + 4 * cout_p)
    vmem_limit = min(max(int(1.5 * vmem_bytes), 8 << 20), 32 << 20)

    return pl.pallas_call(
        kernel,
        out_shape=jax.ShapeDtypeStruct((npad, cout_p), out_dtype),
        grid=grid,
        in_specs=[
            pl.BlockSpec((tm, tk), lambda i, k: (i, k)),            # A tile
            pl.BlockSpec((tk, cin_p), lambda i, k: (k, 0)),         # X (agg)
            pl.BlockSpec((tm, cin_p), lambda i, k: (i, 0)),         # X (root)
            pl.BlockSpec((2 * cin_p, cout_p), lambda i, k: (0, 0)), # W stacked
            pl.BlockSpec((1, cout_p), lambda i, k: (0, 0)),         # bias
        ],
        out_specs=pl.BlockSpec((tm, cout_p), lambda i, k: (i, 0)),
        scratch_shapes=[pltpu.VMEM((tm, cin_p), jnp.float32)],
        compiler_params=pltpu.CompilerParams(
            dimension_semantics=("parallel", "arbitrary"),
            vmem_limit_bytes=vmem_limit),
        cost_estimate=pl.CostEstimate(
            flops=flops, transcendentals=0, bytes_accessed=bytes_accessed),
    )(a, x, x, w_stacked, b)


def encoder_gnn_forward(x, edge_index, edge_weight, params):
    """x: [N, Cin] f32; edge_index: [2, E] int32 (row 0 = src, row 1 = dst);
    edge_weight: [E] f32 (passed through sigmoid, as edge_weighted=True)."""
    N, cin = x.shape
    hid = params["w1_rel"].shape[1]
    cout = params["w2_rel"].shape[1]

    cin_p = _round_up(cin, 128)
    hid_p = _round_up(hid, 128)
    cout_p = _round_up(cout, 128)
    npad, tm, tk = _pick_tiles(N)

    # ---- glue: edge sigmoid + COO -> dense adjacency A[dst, src] += e ----
    # TODO(synk): for E << N^2 a scalar-prefetch gather kernel over edge_index
    # (no densification) is the structural win; the COO scatter-add itself has
    # no clean Pallas TPU equivalent, so it stays in plain JAX.
    w = jax.nn.sigmoid(edge_weight).astype(jnp.float32)
    a = jnp.zeros((npad, npad), jnp.float32).at[edge_index[1], edge_index[0]].add(w)
    a = a.astype(jnp.bfloat16)  # bf16 MXU operands, f32 accumulation in-kernel

    x_p = jnp.zeros((npad, cin_p), jnp.bfloat16).at[:N, :cin].set(
        x.astype(jnp.bfloat16))

    def stack_w(w_rel, w_root, ip, op):
        ws = jnp.zeros((2 * ip, op), jnp.float32)
        ws = ws.at[:w_rel.shape[0], :w_rel.shape[1]].set(w_rel)
        ws = ws.at[ip:ip + w_root.shape[0], :w_root.shape[1]].set(w_root)
        return ws.astype(jnp.bfloat16)

    w1 = stack_w(params["w1_rel"], params["w1_root"], cin_p, hid_p)
    b1 = jnp.zeros((1, hid_p), jnp.float32).at[:, :hid].set(params["b1"])
    w2 = stack_w(params["w2_rel"], params["w2_root"], hid_p, cout_p)
    b2 = jnp.zeros((1, cout_p), jnp.float32).at[:, :cout].set(params["b2"])

    # Layer 1: GraphConv(Cin -> H) + ReLU (bf16 output feeds layer 2 directly).
    h = _graphconv_layer(a, x_p, w1, b1, tm, tk,
                         apply_relu=True, out_dtype=jnp.bfloat16)
    # Layer 2: GraphConv(H -> Cout), f32 output.
    y = _graphconv_layer(a, h, w2, b2, tm, tk,
                         apply_relu=False, out_dtype=jnp.float32)

    return y[:N, :cout]


def init_params(key, in_channels, hidden_channels, out_channels):
    """GraphConv has lin_rel (with bias) and lin_root (no bias).
    Weights stored pre-transposed as [in, out] so the kernel does X @ W."""
    ks = jax.random.split(key, 6)
    s = 0.1
    return {
        "w1_rel":  s * jax.random.normal(ks[0], (in_channels, hidden_channels), jnp.float32),
        "w1_root": s * jax.random.normal(ks[1], (in_channels, hidden_channels), jnp.float32),
        "b1":      s * jax.random.normal(ks[2], (1, hidden_channels), jnp.float32),
        "w2_rel":  s * jax.random.normal(ks[3], (hidden_channels, out_channels), jnp.float32),
        "w2_root": s * jax.random.normal(ks[4], (hidden_channels, out_channels), jnp.float32),
        "b2":      s * jax.random.normal(ks[5], (1, out_channels), jnp.float32),
    }


def _reference_forward(x, edge_index, edge_weight, params):
    """Pure-JAX f32 reference (PyG GraphConv semantics) for validation."""
    N = x.shape[0]
    w = jax.nn.sigmoid(edge_weight)
    A = jnp.zeros((N, N), jnp.float32).at[edge_index[1], edge_index[0]].add(w)
    h = jnp.maximum(A @ x @ params["w1_rel"] + x @ params["w1_root"] + params["b1"], 0.0)
    return A @ h @ params["w2_rel"] + h @ params["w2_root"] + params["b2"]


if __name__ == "__main__":
    key = jax.random.PRNGKey(0)
    k_x, k_src, k_dst, k_w, k_p = jax.random.split(key, 5)

    N, E = 16, 32                 # nodes, edges
    in_channels, hidden_channels, out_channels = 8, 32, 16

    x = jax.random.normal(k_x, (N, in_channels), jnp.float32)
    edge_index = jnp.stack([
        jax.random.randint(k_src, (E,), 0, N, dtype=jnp.int32),   # source nodes
        jax.random.randint(k_dst, (E,), 0, N, dtype=jnp.int32),   # target nodes
    ], axis=0)
    edge_weight = jax.random.normal(k_w, (E,), jnp.float32)

    params = init_params(k_p, in_channels, hidden_channels, out_channels)

    y = encoder_gnn_forward(x, edge_index, edge_weight, params)
    y = jax.block_until_ready(y)
    assert y.shape == (N, out_channels)

    y_ref = _reference_forward(x, edge_index, edge_weight, params)
    assert jnp.allclose(y, y_ref, atol=5e-2, rtol=5e-2), \
        float(jnp.max(jnp.abs(y - y_ref)))

    print("KERNEL_OK")
</pallas_src>

<mosaic_0001>
module attributes {stable_mosaic.version = 11 : i64} {
  func.func @_graphconv_layer_kernel(%arg0: i32, %arg1: i32, %arg2: memref<128x128xbf16, #tpu.memory_space<vmem>>, %arg3: memref<128x128xbf16, #tpu.memory_space<vmem>>, %arg4: memref<128x128xbf16, #tpu.memory_space<vmem>>, %arg5: memref<256x128xbf16, #tpu.memory_space<vmem>>, %arg6: memref<1x128xf32, #tpu.memory_space<vmem>>, %arg7: memref<128x128xbf16, #tpu.memory_space<vmem>>, %arg8: memref<128x128xf32, #tpu.memory_space<vmem>>) attributes {dimension_semantics = [#tpu.dimension_semantics<parallel>, #tpu.dimension_semantics<arbitrary>], iteration_bounds = array<i64: 1, 1>, scalar_prefetch = 0 : i64, scratch_operands = 1 : i64, tpu.core_type = #tpu.core_type<tc>, window_params = [{transform_indices = @transform_0, window_bounds = array<i64: 128, 128>}, {transform_indices = @transform_1, window_bounds = array<i64: 128, 128>}, {transform_indices = @transform_2, window_bounds = array<i64: 128, 128>}, {pipeline_mode = #tpu.pipeline_mode<synchronous>, transform_indices = @transform_3, window_bounds = array<i64: 256, 128>}, {pipeline_mode = #tpu.pipeline_mode<synchronous>, transform_indices = @transform_4, window_bounds = array<i64: 1, 128>}, {transform_indices = @transform_5, window_bounds = array<i64: 128, 128>}]} {
    %c0_i32 = arith.constant 0 : i32
    %0 = arith.cmpi eq, %arg1, %c0_i32 : i32
    %1 = arith.extui %0 : i1 to i32
    %c0_i32_0 = arith.constant 0 : i32
    %2 = arith.cmpi ne, %1, %c0_i32_0 : i32
    scf.if %2 {
      %cst_10 = arith.constant 0.000000e+00 : f32
      %12 = vector.broadcast %cst_10 : f32 to vector<128x128xf32>
      %c0_11 = arith.constant 0 : index
      %c0_12 = arith.constant 0 : index
      %13 = vector.load %arg8[%c0_11, %c0_12] : memref<128x128xf32, #tpu.memory_space<vmem>>, vector<128x128xf32>
      tpu.vector_store %arg8[%c0_11, %c0_12], %12 {strides = array<i32>} : memref<128x128xf32, #tpu.memory_space<vmem>>, vector<128x128xf32>,
    } else {
    }
    %c0 = arith.constant 0 : index
    %c0_1 = arith.constant 0 : index
    %3 = vector.load %arg8[%c0, %c0_1] : memref<128x128xf32, #tpu.memory_space<vmem>>, vector<128x128xf32>
    %c0_2 = arith.constant 0 : index
    %c0_3 = arith.constant 0 : index
    %4 = vector.load %arg2[%c0_2, %c0_3] : memref<128x128xbf16, #tpu.memory_space<vmem>>, vector<128x128xbf16>
    %c0_4 = arith.constant 0 : index
    %c0_5 = arith.constant 0 : index
    %5 = vector.load %arg3[%c0_4, %c0_5] : memref<128x128xbf16, #tpu.memory_space<vmem>>, vector<128x128xbf16>
    %cst = arith.constant dense<0.000000e+00> : vector<128x128xf32>
    %6 = tpu.matmul %4, %5, %cst {dimension_numbers = #tpu.dot_dimension_numbers<[1], [0], [0], [1], [0, 0, 1, 1], [], []>} : vector<128x128xbf16>, vector<128x128xbf16>, vector<128x128xf32> -> vector<128x128xf32>
    %7 = arith.addf %3, %6 : vector<128x128xf32>
    %c0_6 = arith.constant 0 : index
    %c0_7 = arith.constant 0 : index
    %8 = vector.load %arg8[%c0_6, %c0_7] : memref<128x128xf32, #tpu.memory_space<vmem>>, vector<128x128xf32>
    tpu.vector_store %arg8[%c0_6, %c0_7], %7 {strides = array<i32>} : memref<128x128xf32, #tpu.memory_space<vmem>>, vector<128x128xf32>,
    %c0_i32_8 = arith.constant 0 : i32
    %9 = arith.cmpi eq, %arg1, %c0_i32_8 : i32
    %10 = arith.extui %9 : i1 to i32
    %c0_i32_9 = arith.constant 0 : i32
    %11 = arith.cmpi ne, %10, %c0_i32_9 : i32
    scf.if %11 {
      %c0_10 = arith.constant 0 : index
      %c0_11 = arith.constant 0 : index
      %12 = vector.load %arg8[%c0_10, %c0_11] : memref<128x128xf32, #tpu.memory_space<vmem>>, vector<128x128xf32>
      %13 = arith.truncf %12 : vector<128x128xf32> to vector<128x128xbf16>
      %c0_12 = arith.constant 0 : index
      %c0_13 = arith.constant 0 : index
      %14 = vector.load %arg4[%c0_12, %c0_13] : memref<128x128xbf16, #tpu.memory_space<vmem>>, vector<128x128xbf16>
      %15 = tpu.concatenate %13, %14 in 1 : vector<128x128xbf16>, vector<128x128xbf16> -> vector<128x256xbf16>
      %c0_14 = arith.constant 0 : index
      %c0_15 = arith.constant 0 : index
      %16 = vector.load %arg5[%c0_14, %c0_15] : memref<256x128xbf16, #tpu.memory_space<vmem>>, vector<256x128xbf16>
      %cst_16 = arith.constant dense<0.000000e+00> : vector<128x128xf32>
      %17 = tpu.matmul %15, %16, %cst_16 {dimension_numbers = #tpu.dot_dimension_numbers<[1], [0], [0], [1], [0, 0, 1, 1], [], []>} : vector<128x256xbf16>, vector<256x128xbf16>, vector<128x128xf32> -> vector<128x128xf32>
      %c0_17 = arith.constant 0 : index
      %c0_18 = arith.constant 0 : index
      %18 = vector.load %arg6[%c0_17, %c0_18] : memref<1x128xf32, #tpu.memory_space<vmem>>, vector<1x128xf32>
      %19 = vector.broadcast %18 : vector<1x128xf32> to vector<128x128xf32>
      %20 = arith.addf %17, %19 : vector<128x128xf32>
      %cst_19 = arith.constant 0.000000e+00 : f32
      %21 = vector.broadcast %cst_19 : f32 to vector<128x128xf32>
      %22 = arith.maximumf %20, %21 : vector<128x128xf32>
      %23 = arith.truncf %22 : vector<128x128xf32> to vector<128x128xbf16>
      %c0_20 = arith.constant 0 : index
      %c0_21 = arith.constant 0 : index
      %24 = vector.load %arg7[%c0_20, %c0_21] : memref<128x128xbf16, #tpu.memory_space<vmem>>, vector<128x128xbf16>
      tpu.vector_store %arg7[%c0_20, %c0_21], %23 {strides = array<i32>} : memref<128x128xbf16, #tpu.memory_space<vmem>>, vector<128x128xbf16>,
    } else {
    }
    return
  }
  func.func @transform_0(%arg0: i32, %arg1: i32) -> (i32, i32) {
    %c0_i32 = arith.constant 0 : i32
    return %arg0, %arg1 : i32, i32
  }
  func.func @transform_1(%arg0: i32, %arg1: i32) -> (i32, i32) {
    %c0_i32 = arith.constant 0 : i32
    %c0_i32_0 = arith.constant 0 : i32
    return %arg1, %c0_i32 : i32, i32
  }
  func.func @transform_2(%arg0: i32, %arg1: i32) -> (i32, i32) {
    %c0_i32 = arith.constant 0 : i32
    %c0_i32_0 = arith.constant 0 : i32
    return %arg0, %c0_i32 : i32, i32
  }
  func.func @transform_3(%arg0: i32, %arg1: i32) -> (i32, i32) {
    %c0_i32 = arith.constant 0 : i32
    %c0_i32_0 = arith.constant 0 : i32
    %c0_i32_1 = arith.constant 0 : i32
    return %c0_i32, %c0_i32_0 : i32, i32
  }
  func.func @transform_4(%arg0: i32, %arg1: i32) -> (i32, i32) {
    %c0_i32 = arith.constant 0 : i32
    %c0_i32_0 = arith.constant 0 : i32
    %c0_i32_1 = arith.constant 0 : i32
    return %c0_i32, %c0_i32_0 : i32, i32
  }
  func.func @transform_5(%arg0: i32, %arg1: i32) -> (i32, i32) {
    %c0_i32 = arith.constant 0 : i32
    %c0_i32_0 = arith.constant 0 : i32
    return %arg0, %c0_i32 : i32, i32
  }
}

</mosaic_0001>

<llo_original>
// kernel: tpu_custom_call.1
$region0: #{tpu_custom_call.1}
  #allocation0 [shape = 'u32[]', space=smem, size = 0x4, offset = 0x4, fixed_abs, tag = 'smem constant byte address 0x4 - core index']
  #allocation1 [shape = 'u32[72,128]{1,0:T(1,128)}', space=vmem, size = 0x9000, scoped, tag = 'internal scratch']
  #allocation2 [shape = 'f32[128,128]{1,0:T(8,128)}', space=vmem, size = 0x10000, scoped, tag = 'scratch operand']
  %s0 = inlined_call_operand.hbm [shape: bf16[128,128], index: 0, kind: input, shape index: {}]
  %s1 = inlined_call_operand.hbm [shape: bf16[128,128], index: 1, kind: input, shape index: {}]
  %s2 = inlined_call_operand.hbm [shape: bf16[128,128], index: 2, kind: input, shape index: {}]
  %s3 = inlined_call_operand.hbm [shape: bf16[256,128], index: 3, kind: input, shape index: {}]
  %s4 = inlined_call_operand.vmem [shape: f32[1,128], index: 4, kind: input, shape index: {}]
  %s5 = inlined_call_operand.hbm [shape: bf16[128,128], index: 5, kind: output, shape index: {}]
  %s6 = sld [smem:[#allocation0]]
  $region54: #{tpu_custom_call.1} parent=0
    _
  %s8 = ssub.s32 1, %s6
  %s9 = scalar_select 0, %s8, %s6
  $region1: #{tpu_custom_call.1} parent=0
    #allocation3 [shape = 'u8[32768]{0}', space=vmem, size = 0x8000, scoped, tag = 'input window, operand 0, single buffered']
    #allocation4 [shape = 's32[1]{0}', space=sflag, size = 0x4, scoped, tag = 'scoped memory for tpu_custom_call.1']
    #allocation5 [shape = 's32[1]{0}', space=sflag, size = 0x4, scoped, tag = 'scoped memory for tpu_custom_call.1']
    #allocation6 [shape = 'u8[32768]{0}', space=vmem, size = 0x8000, scoped, tag = 'input window, operand 1, single buffered']
    #allocation7 [shape = 's32[1]{0}', space=sflag, size = 0x4, scoped, tag = 'scoped memory for tpu_custom_call.1']
    #allocation8 [shape = 'u8[32768]{0}', space=vmem, size = 0x8000, scoped, tag = 'input window, operand 2, single buffered']
    #allocation9 [shape = 'u8[65536]{0}', space=vmem, size = 0x10000, scoped, tag = 'input window, operand 3, single buffered']
    #allocation10 [shape = 's32[1]{0}', space=sflag, size = 0x4, scoped, tag = 'scoped memory for tpu_custom_call.1']
    #allocation11 [shape = 'u8[32768]{0}', space=vmem, size = 0x8000, scoped, tag = 'output window, operand 0, single buffered']
    %10 = vsyncpa [#allocation4], 0
    %11 = vsyncpa [#allocation7], 0
    %12 = vsyncpa [#allocation10], 0
    %13 = vsyncpa [#allocation5], 0
    // Predicated region
    $region2: #{tpu_custom_call.1} parent=1 // pred_check
      _
    $region3: #{tpu_custom_call.1} parent=1 // pred_check_branch
      %15 = sbr.rel (0) target = $region5
    $region4: #{tpu_custom_call.1} parent=1 // pred_region
      %17 = vsyncadd [#allocation4], 0
      %s18 = sshll.u32 %s0, 4
      %s19 = int_to_ptr.hbm [resolvable:$true] %s18
      %s20 = sshll.u32 [#allocation3], 4
      %s21 = int_to_ptr.vmem [resolvable:$true] %s20
      %26 = dma.hbm_to_vmem [thread:$0]  %s19, 1024, %s21, [#allocation4], 64, 64, 4
    $region5: #{tpu_custom_call.1} parent=1 // pred_fallthru
      _
    // Predicated region
    $region6: #{tpu_custom_call.1} parent=1 // pred_check
      _
    $region7: #{tpu_custom_call.1} parent=1 // pred_check_branch
      %28 = sbr.rel (0) target = $region9
    $region8: #{tpu_custom_call.1} parent=1 // pred_region
      %30 = vsyncadd [#allocation7], 0
      %s31 = sshll.u32 %s1, 4
      %s32 = int_to_ptr.hbm [resolvable:$true] %s31
      %s33 = sshll.u32 [#allocation6], 4
      %s34 = int_to_ptr.vmem [resolvable:$true] %s33
      %39 = dma.hbm_to_vmem [thread:$0]  %s32, 1024, %s34, [#allocation7], 64, 64, 4
    $region9: #{tpu_custom_call.1} parent=1 // pred_fallthru
      _
    // Predicated region
    $region10: #{tpu_custom_call.1} parent=1 // pred_check
      _
    $region11: #{tpu_custom_call.1} parent=1 // pred_check_branch
      %41 = sbr.rel (0) target = $region13
    $region12: #{tpu_custom_call.1} parent=1 // pred_region
      %43 = vsyncadd [#allocation7], 0
      %s44 = sshll.u32 %s2, 4
      %s45 = int_to_ptr.hbm [resolvable:$true] %s44
      %s46 = sshll.u32 [#allocation8], 4
      %s47 = int_to_ptr.vmem [resolvable:$true] %s46
      %52 = dma.hbm_to_vmem [thread:$0]  %s45, 1024, %s47, [#allocation7], 64, 64, 4
    $region13: #{tpu_custom_call.1} parent=1 // pred_fallthru
      _
    // Predicated region
    $region14: #{tpu_custom_call.1} parent=1 // pred_check
      _
    $region15: #{tpu_custom_call.1} parent=1 // pred_check_branch
      %54 = sbr.rel (0) target = $region17
    $region16: #{tpu_custom_call.1} parent=1 // pred_region
      %56 = vsyncadd [#allocation10], 0
      %s57 = sshll.u32 %s3, 4
      %s58 = int_to_ptr.hbm [resolvable:$true] %s57
      %s59 = sshll.u32 [#allocation9], 4
      %s60 = int_to_ptr.vmem [resolvable:$true] %s59
      %65 = dma.hbm_to_vmem [thread:$0]  %s58, 2048, %s60, [#allocation10], 64, 64, 4
    $region17: #{tpu_custom_call.1} parent=1 // pred_fallthru
      _
    // Predicated region
    $region18: #{tpu_custom_call.1} parent=1 // pred_check
      _
    $region19: #{tpu_custom_call.1} parent=1 // pred_check_branch
      %67 = sbr.rel (0) target = $region21
    $region20: #{tpu_custom_call.1} parent=1 // pred_region
      _
    $region21: #{tpu_custom_call.1} parent=1 // pred_fallthru
      _
    // Predicated region
    $region22: #{tpu_custom_call.1} parent=1 // pred_check
      _
    $region23: #{tpu_custom_call.1} parent=1 // pred_check_branch
      %69 = sbr.rel (0) target = $region25
    $region24: #{tpu_custom_call.1} parent=1 // pred_region
      %71 = dma.done [#allocation4], 1024
    $region25: #{tpu_custom_call.1} parent=1 // pred_fallthru
      _
    // Predicated region
    $region26: #{tpu_custom_call.1} parent=1 // pred_check
      _
    $region27: #{tpu_custom_call.1} parent=1 // pred_check_branch
      %73 = sbr.rel (0) target = $region29
    $region28: #{tpu_custom_call.1} parent=1 // pred_region
      %75 = dma.done [#allocation7], 1024
    $region29: #{tpu_custom_call.1} parent=1 // pred_fallthru
      _
    // Predicated region
    $region30: #{tpu_custom_call.1} parent=1 // pred_check
      _
    $region31: #{tpu_custom_call.1} parent=1 // pred_check_branch
      %77 = sbr.rel (0) target = $region33
    $region32: #{tpu_custom_call.1} parent=1 // pred_region
      %79 = dma.done [#allocation7], 1024
    $region33: #{tpu_custom_call.1} parent=1 // pred_fallthru
      _
    // Predicated region
    $region34: #{tpu_custom_call.1} parent=1 // pred_check
      _
    $region35: #{tpu_custom_call.1} parent=1 // pred_check_branch
      %81 = sbr.rel (0) target = $region37
    $region36: #{tpu_custom_call.1} parent=1 // pred_region
      %83 = dma.done [#allocation10], 2048
    $region37: #{tpu_custom_call.1} parent=1 // pred_fallthru
      _
    %p84 = scmp.eq.s32.totalorder 0, 0
    // Predicated region
    $region38: #{tpu_custom_call.1} parent=1 // pred_check
      %p85 = pneg %p84
    $region39: #{tpu_custom_call.1} parent=1 // pred_check_branch
      %87 = sbr.rel (%p85) target = $region41
    $region40: #{tpu_custom_call.1} parent=1 // pred_region
      %88 = vst [vmem:[#allocation2] sm:$0xff] 0.0
      %89 = vst [vmem:[#allocation2 + $0x8] sm:$0xff] 0.0
      %90 = vst [vmem:[#allocation2 + $0x10] sm:$0xff] 0.0
      %91 = vst [vmem:[#allocation2 + $0x18] sm:$0xff] 0.0
      %92 = vst [vmem:[#allocation2 + $0x20] sm:$0xff] 0.0
      %93 = vst [vmem:[#allocation2 + $0x28] sm:$0xff] 0.0
      %94 = vst [vmem:[#allocation2 + $0x30] sm:$0xff] 0.0
      %95 = vst [vmem:[#allocation2 + $0x38] sm:$0xff] 0.0
      %96 = vst [vmem:[#allocation2 + $0x40] sm:$0xff] 0.0
      %97 = vst [vmem:[#allocation2 + $0x48] sm:$0xff] 0.0
      %98 = vst [vmem:[#allocation2 + $0x50] sm:$0xff] 0.0
      %99 = vst [vmem:[#allocation2 + $0x58] sm:$0xff] 0.0
      %100 = vst [vmem:[#allocation2 + $0x60] sm:$0xff] 0.0
      %101 = vst [vmem:[#allocation2 + $0x68] sm:$0xff] 0.0
      %102 = vst [vmem:[#allocation2 + $0x70] sm:$0xff] 0.0
      %103 = vst [vmem:[#allocation2 + $0x78] sm:$0xff] 0.0
    $region41: #{tpu_custom_call.1} parent=1 // pred_fallthru
      _
    %v104 = vld [vmem:[#allocation2] sm:$0xff]
    %v105 = vld [vmem:[#allocation2 + $0x8] sm:$0xff]
    %v106 = vld [vmem:[#allocation2 + $0x10] sm:$0xff]
    %v107 = vld [vmem:[#allocation2 + $0x18] sm:$0xff]
    %v108 = vld [vmem:[#allocation2 + $0x20] sm:$0xff]
    %v109 = vld [vmem:[#allocation2 + $0x28] sm:$0xff]
    %v110 = vld [vmem:[#allocation2 + $0x30] sm:$0xff]
    %v111 = vld [vmem:[#allocation2 + $0x38] sm:$0xff]
    %v112 = vld [vmem:[#allocation2 + $0x40] sm:$0xff]
    %v113 = vld [vmem:[#allocation2 + $0x48] sm:$0xff]
    %v114 = vld [vmem:[#allocation2 + $0x50] sm:$0xff]
    %v115 = vld [vmem:[#allocation2 + $0x58] sm:$0xff]
    %v116 = vld [vmem:[#allocation2 + $0x60] sm:$0xff]
    %v117 = vld [vmem:[#allocation2 + $0x68] sm:$0xff]
    %v118 = vld [vmem:[#allocation2 + $0x70] sm:$0xff]
    %v119 = vld [vmem:[#allocation2 + $0x78] sm:$0xff]
    %v120 = vld [vmem:[#allocation3] sm:$0xf]
    %v121 = vld [vmem:[#allocation3 + $0x4] sm:$0xf]
    %v122 = vld [vmem:[#allocation3 + $0x8] sm:$0xf]
    %v123 = vld [vmem:[#allocation3 + $0xc] sm:$0xf]
    %v124 = vld [vmem:[#allocation3 + $0x10] sm:$0xf]
    %v125 = vld [vmem:[#allocation3 + $0x14] sm:$0xf]
    %v126 = vld [vmem:[#allocation3 + $0x18] sm:$0xf]
    %v127 = vld [vmem:[#allocation3 + $0x1c] sm:$0xf]
    %v128 = vld [vmem:[#allocation3 + $0x20] sm:$0xf]
    %v129 = vld [vmem:[#allocation3 + $0x24] sm:$0xf]
    %v130 = vld [vmem:[#allocation3 + $0x28] sm:$0xf]
    %v131 = vld [vmem:[#allocation3 + $0x2c] sm:$0xf]
    %v132 = vld [vmem:[#allocation3 + $0x30] sm:$0xf]
    %v133 = vld [vmem:[#allocation3 + $0x34] sm:$0xf]
    %v134 = vld [vmem:[#allocation3 + $0x38] sm:$0xf]
    %v135 = vld [vmem:[#allocation3 + $0x3c] sm:$0xf]
    %v136 = vld [vmem:[#allocation6] sm:$0xf]
    %v137 = vld [vmem:[#allocation6 + $0x4] sm:$0xf]
    %v138 = vld [vmem:[#allocation6 + $0x8] sm:$0xf]
    %v139 = vld [vmem:[#allocation6 + $0xc] sm:$0xf]
    %v140 = vld [vmem:[#allocation6 + $0x10] sm:$0xf]
    %v141 = vld [vmem:[#allocation6 + $0x14] sm:$0xf]
    %v142 = vld [vmem:[#allocation6 + $0x18] sm:$0xf]
    %v143 = vld [vmem:[#allocation6 + $0x1c] sm:$0xf]
    %v144 = vld [vmem:[#allocation6 + $0x20] sm:$0xf]
    %v145 = vld [vmem:[#allocation6 + $0x24] sm:$0xf]
    %v146 = vld [vmem:[#allocation6 + $0x28] sm:$0xf]
    %v147 = vld [vmem:[#allocation6 + $0x2c] sm:$0xf]
    %v148 = vld [vmem:[#allocation6 + $0x30] sm:$0xf]
    %v149 = vld [vmem:[#allocation6 + $0x34] sm:$0xf]
    %v150 = vld [vmem:[#allocation6 + $0x38] sm:$0xf]
    %v151 = vld [vmem:[#allocation6 + $0x3c] sm:$0xf]
    %v168 = vunpack.c.l.b16 %v120
    %v169 = vunpack.c.l.b16 %v121
    %v170 = vunpack.c.l.b16 %v122
    %v171 = vunpack.c.l.b16 %v123
    %v172 = vunpack.c.l.b16 %v124
    %v173 = vunpack.c.l.b16 %v125
    %v174 = vunpack.c.l.b16 %v126
    %v175 = vunpack.c.l.b16 %v127
    %v176 = vunpack.c.l.b16 %v128
    %v177 = vunpack.c.l.b16 %v129
    %v178 = vunpack.c.l.b16 %v130
    %v179 = vunpack.c.l.b16 %v131
    %v180 = vunpack.c.l.b16 %v132
    %v181 = vunpack.c.l.b16 %v133
    %v182 = vunpack.c.l.b16 %v134
    %v183 = vunpack.c.l.b16 %v135
    %v184 = vpack.c.b16 %v169, %v168
    %v185 = vpack.c.b16 %v171, %v170
    %v186 = vpack.c.b16 %v173, %v172
    %v187 = vpack.c.b16 %v175, %v174
    %v188 = vpack.c.b16 %v177, %v176
    %v189 = vpack.c.b16 %v179, %v178
    %v190 = vpack.c.b16 %v181, %v180
    %v191 = vpack.c.b16 %v183, %v182
    %v216 = vunpack.c.l.b16 %v136
    %v217 = vunpack.c.l.b16 %v137
    %v218 = vunpack.c.l.b16 %v138
    %v219 = vunpack.c.l.b16 %v139
    %v220 = vunpack.c.l.b16 %v140
    %v221 = vunpack.c.l.b16 %v141
    %v222 = vunpack.c.l.b16 %v142
    %v223 = vunpack.c.l.b16 %v143
    %v224 = vunpack.c.l.b16 %v144
    %v225 = vunpack.c.l.b16 %v145
    %v226 = vunpack.c.l.b16 %v146
    %v227 = vunpack.c.l.b16 %v147
    %v228 = vunpack.c.l.b16 %v148
    %v229 = vunpack.c.l.b16 %v149
    %v230 = vunpack.c.l.b16 %v150
    %v231 = vunpack.c.l.b16 %v151
    %v232 = vpack.c.b16 %v217, %v216
    %v233 = vpack.c.b16 %v219, %v218
    %v234 = vpack.c.b16 %v221, %v220
    %v235 = vpack.c.b16 %v223, %v222
    %v236 = vpack.c.b16 %v225, %v224
    %v237 = vpack.c.b16 %v227, %v226
    %v238 = vpack.c.b16 %v229, %v228
    %v239 = vpack.c.b16 %v231, %v230
    %248 = vmatpush.bf16.msra.mxu0 %v239
    %249 = vmatpush.bf16.msra.mxu0 %v238
    %250 = vmatpush.bf16.msra.mxu0 %v237
    %251 = vmatpush.bf16.msra.mxu0 %v236
    %252 = vmatpush.bf16.msra.mxu0 %v235
    %253 = vmatpush.bf16.msra.mxu0 %v234
    %254 = vmatpush.bf16.msra.mxu0 %v233
    %255 = vmatpush.bf16.msra.mxu0 %v232
    %256 = vmatmul.bf16.gmra.mxu0 %v184
    %v257 = vpop.f32.mrf.mxu0
    %v258 = vadd.f32 0.0, %v257
    %v259 = vpop.f32.mrf.mxu0
    %v260 = vadd.f32 0.0, %v259
    %261 = vmatmul.bf16.gmra.mxu0 %v185
    %v262 = vpop.f32.mrf.mxu0
    %v263 = vadd.f32 0.0, %v262
    %v264 = vpop.f32.mrf.mxu0
    %v265 = vadd.f32 0.0, %v264
    %266 = vmatmul.bf16.gmra.mxu0 %v186
    %v267 = vpop.f32.mrf.mxu0
    %v268 = vadd.f32 0.0, %v267
    %v269 = vpop.f32.mrf.mxu0
    %v270 = vadd.f32 0.0, %v269
    %271 = vmatmul.bf16.gmra.mxu0 %v187
    %v272 = vpop.f32.mrf.mxu0
    %v273 = vadd.f32 0.0, %v272
    %v274 = vpop.f32.mrf.mxu0
    %v275 = vadd.f32 0.0, %v274
    %276 = vmatmul.bf16.gmra.mxu0 %v188
    %v277 = vpop.f32.mrf.mxu0
    %v278 = vadd.f32 0.0, %v277
    %v279 = vpop.f32.mrf.mxu0
    %v280 = vadd.f32 0.0, %v279
    %281 = vmatmul.bf16.gmra.mxu0 %v189
    %v282 = vpop.f32.mrf.mxu0
    %v283 = vadd.f32 0.0, %v282
    %v284 = vpop.f32.mrf.mxu0
    %v285 = vadd.f32 0.0, %v284
    %286 = vmatmul.bf16.gmra.mxu0 %v190
    %v287 = vpop.f32.mrf.mxu0
    %v288 = vadd.f32 0.0, %v287
    %v289 = vpop.f32.mrf.mxu0
    %v290 = vadd.f32 0.0, %v289
    %291 = vmatmul.bf16.gmra.mxu0 %v191
    %v292 = vpop.f32.mrf.mxu0
    %v293 = vadd.f32 0.0, %v292
    %v294 = vpop.f32.mrf.mxu0
    %v295 = vadd.f32 0.0, %v294
    %296 = vdwg.mxu0
    %v297 = vadd.f32 %v104, %v258
    %v298 = vadd.f32 %v105, %v260
    %v299 = vadd.f32 %v106, %v263
    %v300 = vadd.f32 %v107, %v265
    %v301 = vadd.f32 %v108, %v268
    %v302 = vadd.f32 %v109, %v270
    %v303 = vadd.f32 %v110, %v273
    %v304 = vadd.f32 %v111, %v275
    %v305 = vadd.f32 %v112, %v278
    %v306 = vadd.f32 %v113, %v280
    %v307 = vadd.f32 %v114, %v283
    %v308 = vadd.f32 %v115, %v285
    %v309 = vadd.f32 %v116, %v288
    %v310 = vadd.f32 %v117, %v290
    %v311 = vadd.f32 %v118, %v293
    %v312 = vadd.f32 %v119, %v295
    %313 = vst [vmem:[#allocation2] sm:$0xff] %v297
    %314 = vst [vmem:[#allocation2 + $0x8] sm:$0xff] %v298
    %315 = vst [vmem:[#allocation2 + $0x10] sm:$0xff] %v299
    %316 = vst [vmem:[#allocation2 + $0x18] sm:$0xff] %v300
    %317 = vst [vmem:[#allocation2 + $0x20] sm:$0xff] %v301
    %318 = vst [vmem:[#allocation2 + $0x28] sm:$0xff] %v302
    %319 = vst [vmem:[#allocation2 + $0x30] sm:$0xff] %v303
    %320 = vst [vmem:[#allocation2 + $0x38] sm:$0xff] %v304
    %321 = vst [vmem:[#allocation2 + $0x40] sm:$0xff] %v305
    %322 = vst [vmem:[#allocation2 + $0x48] sm:$0xff] %v306
    %323 = vst [vmem:[#allocation2 + $0x50] sm:$0xff] %v307
    %324 = vst [vmem:[#allocation2 + $0x58] sm:$0xff] %v308
    %325 = vst [vmem:[#allocation2 + $0x60] sm:$0xff] %v309
    %326 = vst [vmem:[#allocation2 + $0x68] sm:$0xff] %v310
    %327 = vst [vmem:[#allocation2 + $0x70] sm:$0xff] %v311
    %328 = vst [vmem:[#allocation2 + $0x78] sm:$0xff] %v312
    // Predicated region
    $region42: #{tpu_custom_call.1} parent=1 // pred_check
      %p329 = pneg %p84
    $region43: #{tpu_custom_call.1} parent=1 // pred_check_branch
      %331 = sbr.rel (%p329) target = $region45
    $region44: #{tpu_custom_call.1} parent=1 // pred_region
      %v332 = vld [vmem:[#allocation2] sm:$0xff]
      %v333 = vld [vmem:[#allocation2 + $0x8] sm:$0xff]
      %v334 = vld [vmem:[#allocation2 + $0x10] sm:$0xff]
      %v335 = vld [vmem:[#allocation2 + $0x18] sm:$0xff]
      %v336 = vld [vmem:[#allocation2 + $0x20] sm:$0xff]
      %v337 = vld [vmem:[#allocation2 + $0x28] sm:$0xff]
      %v338 = vld [vmem:[#allocation2 + $0x30] sm:$0xff]
      %v339 = vld [vmem:[#allocation2 + $0x38] sm:$0xff]
      %v340 = vld [vmem:[#allocation2 + $0x40] sm:$0xff]
      %v341 = vld [vmem:[#allocation2 + $0x48] sm:$0xff]
      %v342 = vld [vmem:[#allocation2 + $0x50] sm:$0xff]
      %v343 = vld [vmem:[#allocation2 + $0x58] sm:$0xff]
      %v344 = vld [vmem:[#allocation2 + $0x60] sm:$0xff]
      %v345 = vld [vmem:[#allocation2 + $0x68] sm:$0xff]
      %v346 = vld [vmem:[#allocation2 + $0x70] sm:$0xff]
      %v347 = vld [vmem:[#allocation2 + $0x78] sm:$0xff]
      %v348 = vpack.c.bf16 %v332, %v332
      %v349 = vpack.c.bf16 %v333, %v333
      %v350 = vpack.c.bf16 %v334, %v334
      %v351 = vpack.c.bf16 %v335, %v335
      %v352 = vpack.c.bf16 %v336, %v336
      %v353 = vpack.c.bf16 %v337, %v337
      %v354 = vpack.c.bf16 %v338, %v338
      %v355 = vpack.c.bf16 %v339, %v339
      %v356 = vpack.c.bf16 %v340, %v340
      %v357 = vpack.c.bf16 %v341, %v341
      %v358 = vpack.c.bf16 %v342, %v342
      %v359 = vpack.c.bf16 %v343, %v343
      %v360 = vpack.c.bf16 %v344, %v344
      %v361 = vpack.c.bf16 %v345, %v345
      %v362 = vpack.c.bf16 %v346, %v346
      %v363 = vpack.c.bf16 %v347, %v347
      %v364 = vld [vmem:[#allocation8] sm:$0xf]
      %v365 = vld [vmem:[#allocation8 + $0x4] sm:$0xf]
      %v366 = vld [vmem:[#allocation8 + $0x8] sm:$0xf]
      %v367 = vld [vmem:[#allocation8 + $0xc] sm:$0xf]
      %v368 = vld [vmem:[#allocation8 + $0x10] sm:$0xf]
      %v369 = vld [vmem:[#allocation8 + $0x14] sm:$0xf]
      %v370 = vld [vmem:[#allocation8 + $0x18] sm:$0xf]
      %v371 = vld [vmem:[#allocation8 + $0x1c] sm:$0xf]
      %v372 = vld [vmem:[#allocation8 + $0x20] sm:$0xf]
      %v373 = vld [vmem:[#allocation8 + $0x24] sm:$0xf]
      %v374 = vld [vmem:[#allocation8 + $0x28] sm:$0xf]
      %v375 = vld [vmem:[#allocation8 + $0x2c] sm:$0xf]
      %v376 = vld [vmem:[#allocation8 + $0x30] sm:$0xf]
      %v377 = vld [vmem:[#allocation8 + $0x34] sm:$0xf]
      %v378 = vld [vmem:[#allocation8 + $0x38] sm:$0xf]
      %v379 = vld [vmem:[#allocation8 + $0x3c] sm:$0xf]
      %v396 = vunpack.c.l.b16 %v348
      %v397 = vunpack.c.l.b16 %v349
      %v398 = vunpack.c.l.b16 %v350
      %v399 = vunpack.c.l.b16 %v351
      %v400 = vunpack.c.l.b16 %v352
      %v401 = vunpack.c.l.b16 %v353
      %v402 = vunpack.c.l.b16 %v354
      %v403 = vunpack.c.l.b16 %v355
      %v404 = vunpack.c.l.b16 %v356
      %v405 = vunpack.c.l.b16 %v357
      %v406 = vunpack.c.l.b16 %v358
      %v407 = vunpack.c.l.b16 %v359
      %v408 = vunpack.c.l.b16 %v360
      %v409 = vunpack.c.l.b16 %v361
      %v410 = vunpack.c.l.b16 %v362
      %v411 = vunpack.c.l.b16 %v363
      %v412 = vpack.c.b16 %v397, %v396
      %v413 = vpack.c.b16 %v399, %v398
      %v414 = vpack.c.b16 %v401, %v400
      %v415 = vpack.c.b16 %v403, %v402
      %v416 = vpack.c.b16 %v405, %v404
      %v417 = vpack.c.b16 %v407, %v406
      %v418 = vpack.c.b16 %v409, %v408
      %v419 = vpack.c.b16 %v411, %v410
      %v444 = vunpack.c.l.b16 %v364
      %v445 = vunpack.c.l.b16 %v365
      %v446 = vunpack.c.l.b16 %v366
      %v447 = vunpack.c.l.b16 %v367
      %v448 = vunpack.c.l.b16 %v368
      %v449 = vunpack.c.l.b16 %v369
      %v450 = vunpack.c.l.b16 %v370
      %v451 = vunpack.c.l.b16 %v371
      %v452 = vunpack.c.l.b16 %v372
      %v453 = vunpack.c.l.b16 %v373
      %v454 = vunpack.c.l.b16 %v374
      %v455 = vunpack.c.l.b16 %v375
      %v456 = vunpack.c.l.b16 %v376
      %v457 = vunpack.c.l.b16 %v377
      %v458 = vunpack.c.l.b16 %v378
      %v459 = vunpack.c.l.b16 %v379
      %v460 = vpack.c.b16 %v445, %v444
      %v461 = vpack.c.b16 %v447, %v446
      %v462 = vpack.c.b16 %v449, %v448
      %v463 = vpack.c.b16 %v451, %v450
      %v464 = vpack.c.b16 %v453, %v452
      %v465 = vpack.c.b16 %v455, %v454
      %v466 = vpack.c.b16 %v457, %v456
      %v467 = vpack.c.b16 %v459, %v458
      %v476 = vld [vmem:[#allocation9] sm:$0xf]
      %v477 = vld [vmem:[#allocation9 + $0x4] sm:$0xf]
      %v478 = vld [vmem:[#allocation9 + $0x8] sm:$0xf]
      %v479 = vld [vmem:[#allocation9 + $0xc] sm:$0xf]
      %v480 = vld [vmem:[#allocation9 + $0x10] sm:$0xf]
      %v481 = vld [vmem:[#allocation9 + $0x14] sm:$0xf]
      %v482 = vld [vmem:[#allocation9 + $0x18] sm:$0xf]
      %v483 = vld [vmem:[#allocation9 + $0x1c] sm:$0xf]
      %v484 = vld [vmem:[#allocation9 + $0x20] sm:$0xf]
      %v485 = vld [vmem:[#allocation9 + $0x24] sm:$0xf]
      %v486 = vld [vmem:[#allocation9 + $0x28] sm:$0xf]
      %v487 = vld [vmem:[#allocation9 + $0x2c] sm:$0xf]
      %v488 = vld [vmem:[#allocation9 + $0x30] sm:$0xf]
      %v489 = vld [vmem:[#allocation9 + $0x34] sm:$0xf]
      %v490 = vld [vmem:[#allocation9 + $0x38] sm:$0xf]
      %v491 = vld [vmem:[#allocation9 + $0x3c] sm:$0xf]
      %v492 = vld [vmem:[#allocation9 + $0x40] sm:$0xf]
      %v493 = vld [vmem:[#allocation9 + $0x44] sm:$0xf]
      %v494 = vld [vmem:[#allocation9 + $0x48] sm:$0xf]
      %v495 = vld [vmem:[#allocation9 + $0x4c] sm:$0xf]
      %v496 = vld [vmem:[#allocation9 + $0x50] sm:$0xf]
      %v497 = vld [vmem:[#allocation9 + $0x54] sm:$0xf]
      %v498 = vld [vmem:[#allocation9 + $0x58] sm:$0xf]
      %v499 = vld [vmem:[#allocation9 + $0x5c] sm:$0xf]
      %v500 = vld [vmem:[#allocation9 + $0x60] sm:$0xf]
      %v501 = vld [vmem:[#allocation9 + $0x64] sm:$0xf]
      %v502 = vld [vmem:[#allocation9 + $0x68] sm:$0xf]
      %v503 = vld [vmem:[#allocation9 + $0x6c] sm:$0xf]
      %v504 = vld [vmem:[#allocation9 + $0x70] sm:$0xf]
      %v505 = vld [vmem:[#allocation9 + $0x74] sm:$0xf]
      %v506 = vld [vmem:[#allocation9 + $0x78] sm:$0xf]
      %v507 = vld [vmem:[#allocation9 + $0x7c] sm:$0xf]
      %v508 = vld [vmem:[%s4] sm:$0x1]
      %v510 = vperm.slane %v508, 0
      %v544 = vunpack.c.l.b16 %v476
      %v545 = vunpack.c.l.b16 %v477
      %v546 = vunpack.c.l.b16 %v478
      %v547 = vunpack.c.l.b16 %v479
      %v548 = vunpack.c.l.b16 %v480
      %v549 = vunpack.c.l.b16 %v481
      %v550 = vunpack.c.l.b16 %v482
      %v551 = vunpack.c.l.b16 %v483
      %v552 = vunpack.c.l.b16 %v484
      %v553 = vunpack.c.l.b16 %v485
      %v554 = vunpack.c.l.b16 %v486
      %v555 = vunpack.c.l.b16 %v487
      %v556 = vunpack.c.l.b16 %v488
      %v557 = vunpack.c.l.b16 %v489
      %v558 = vunpack.c.l.b16 %v490
      %v559 = vunpack.c.l.b16 %v491
      %v560 = vunpack.c.l.b16 %v492
      %v561 = vunpack.c.l.b16 %v493
      %v562 = vunpack.c.l.b16 %v494
      %v563 = vunpack.c.l.b16 %v495
      %v564 = vunpack.c.l.b16 %v496
      %v565 = vunpack.c.l.b16 %v497
      %v566 = vunpack.c.l.b16 %v498
      %v567 = vunpack.c.l.b16 %v499
      %v568 = vunpack.c.l.b16 %v500
      %v569 = vunpack.c.l.b16 %v501
      %v570 = vunpack.c.l.b16 %v502
      %v571 = vunpack.c.l.b16 %v503
      %v572 = vunpack.c.l.b16 %v504
      %v573 = vunpack.c.l.b16 %v505
      %v574 = vunpack.c.l.b16 %v506
      %v575 = vunpack.c.l.b16 %v507
      %v576 = vpack.c.b16 %v545, %v544
      %v577 = vpack.c.b16 %v547, %v546
      %v578 = vpack.c.b16 %v549, %v548
      %v579 = vpack.c.b16 %v551, %v550
      %v580 = vpack.c.b16 %v553, %v552
      %v581 = vpack.c.b16 %v555, %v554
      %v582 = vpack.c.b16 %v557, %v556
      %v583 = vpack.c.b16 %v559, %v558
      %v584 = vpack.c.b16 %v561, %v560
      %v585 = vpack.c.b16 %v563, %v562
      %v586 = vpack.c.b16 %v565, %v564
      %v587 = vpack.c.b16 %v567, %v566
      %v588 = vpack.c.b16 %v569, %v568
      %v589 = vpack.c.b16 %v571, %v570
      %v590 = vpack.c.b16 %v573, %v572
      %v591 = vpack.c.b16 %v575, %v574
      %608 = vmatpush.bf16.msra.mxu0 %v583
      %609 = vmatpush.bf16.msra.mxu0 %v582
      %610 = vmatpush.bf16.msra.mxu0 %v581
      %611 = vmatpush.bf16.msra.mxu0 %v580
      %612 = vmatpush.bf16.msra.mxu0 %v579
      %613 = vmatpush.bf16.msra.mxu0 %v578
      %614 = vmatpush.bf16.msra.mxu0 %v577
      %615 = vmatpush.bf16.msra.mxu0 %v576
      %616 = vmatmul.bf16.gmra.mxu0 %v412
      %v617 = vpop.f32.mrf.mxu0
      %v618 = vadd.f32 %v510, %v617
      %v619 = vpop.f32.mrf.mxu0
      %v620 = vadd.f32 %v510, %v619
      %621 = vmatmul.bf16.gmra.mxu0 %v413
      %v622 = vpop.f32.mrf.mxu0
      %v623 = vadd.f32 %v510, %v622
      %v624 = vpop.f32.mrf.mxu0
      %v625 = vadd.f32 %v510, %v624
      %626 = vmatmul.bf16.gmra.mxu0 %v414
      %v627 = vpop.f32.mrf.mxu0
      %v628 = vadd.f32 %v510, %v627
      %v629 = vpop.f32.mrf.mxu0
      %v630 = vadd.f32 %v510, %v629
      %631 = vmatmul.bf16.gmra.mxu0 %v415
      %v632 = vpop.f32.mrf.mxu0
      %v633 = vadd.f32 %v510, %v632
      %v634 = vpop.f32.mrf.mxu0
      %v635 = vadd.f32 %v510, %v634
      %636 = vmatmul.bf16.gmra.mxu0 %v416
      %v637 = vpop.f32.mrf.mxu0
      %v638 = vadd.f32 %v510, %v637
      %v639 = vpop.f32.mrf.mxu0
      %v640 = vadd.f32 %v510, %v639
      %641 = vmatmul.bf16.gmra.mxu0 %v417
      %v642 = vpop.f32.mrf.mxu0
      %v643 = vadd.f32 %v510, %v642
      %v644 = vpop.f32.mrf.mxu0
      %v645 = vadd.f32 %v510, %v644
      %646 = vmatmul.bf16.gmra.mxu0 %v418
      %v647 = vpop.f32.mrf.mxu0
      %v648 = vadd.f32 %v510, %v647
      %v649 = vpop.f32.mrf.mxu0
      %v650 = vadd.f32 %v510, %v649
      %651 = vmatmul.bf16.gmra.mxu0 %v419
      %v652 = vpop.f32.mrf.mxu0
      %v653 = vadd.f32 %v510, %v652
      %v654 = vpop.f32.mrf.mxu0
      %v655 = vadd.f32 %v510, %v654
      %656 = vdwg.mxu0
      %657 = vmatpush.bf16.msra.mxu0 %v591
      %658 = vmatpush.bf16.msra.mxu0 %v590
      %659 = vmatpush.bf16.msra.mxu0 %v589
      %660 = vmatpush.bf16.msra.mxu0 %v588
      %661 = vmatpush.bf16.msra.mxu0 %v587
      %662 = vmatpush.bf16.msra.mxu0 %v586
      %663 = vmatpush.bf16.msra.mxu0 %v585
      %664 = vmatpush.bf16.msra.mxu0 %v584
      %665 = vmatmul.bf16.gmra.mxu0 %v460
      %v666 = vpop.f32.mrf.mxu0
      %v667 = vadd.f32 %v618, %v666
      %v668 = vpop.f32.mrf.mxu0
      %v669 = vadd.f32 %v620, %v668
      %670 = vmatmul.bf16.gmra.mxu0 %v461
      %v671 = vpop.f32.mrf.mxu0
      %v672 = vadd.f32 %v623, %v671
      %v673 = vpop.f32.mrf.mxu0
      %v674 = vadd.f32 %v625, %v673
      %675 = vmatmul.bf16.gmra.mxu0 %v462
      %v676 = vpop.f32.mrf.mxu0
      %v677 = vadd.f32 %v628, %v676
      %v678 = vpop.f32.mrf.mxu0
      %v679 = vadd.f32 %v630, %v678
      %680 = vmatmul.bf16.gmra.mxu0 %v463
      %v681 = vpop.f32.mrf.mxu0
      %v682 = vadd.f32 %v633, %v681
      %v683 = vpop.f32.mrf.mxu0
      %v684 = vadd.f32 %v635, %v683
      %685 = vmatmul.bf16.gmra.mxu0 %v464
      %v686 = vpop.f32.mrf.mxu0
      %v687 = vadd.f32 %v638, %v686
      %v688 = vpop.f32.mrf.mxu0
      %v689 = vadd.f32 %v640, %v688
      %690 = vmatmul.bf16.gmra.mxu0 %v465
      %v691 = vpop.f32.mrf.mxu0
      %v692 = vadd.f32 %v643, %v691
      %v693 = vpop.f32.mrf.mxu0
      %v694 = vadd.f32 %v645, %v693
      %695 = vmatmul.bf16.gmra.mxu0 %v466
      %v696 = vpop.f32.mrf.mxu0
      %v697 = vadd.f32 %v648, %v696
      %v698 = vpop.f32.mrf.mxu0
      %v699 = vadd.f32 %v650, %v698
      %700 = vmatmul.bf16.gmra.mxu0 %v467
      %v701 = vpop.f32.mrf.mxu0
      %v702 = vadd.f32 %v653, %v701
      %v703 = vpop.f32.mrf.mxu0
      %v704 = vadd.f32 %v655, %v703
      %705 = vdwg.mxu0
      %v706 = vmax.f32 %v667, 0.0
      %v707 = vmax.f32 %v669, 0.0
      %v708 = vmax.f32 %v672, 0.0
      %v709 = vmax.f32 %v674, 0.0
      %v710 = vmax.f32 %v677, 0.0
      %v711 = vmax.f32 %v679, 0.0
      %v712 = vmax.f32 %v682, 0.0
      %v713 = vmax.f32 %v684, 0.0
      %v714 = vmax.f32 %v687, 0.0
      %v715 = vmax.f32 %v689, 0.0
      %v716 = vmax.f32 %v692, 0.0
      %v717 = vmax.f32 %v694, 0.0
      %v718 = vmax.f32 %v697, 0.0
      %v719 = vmax.f32 %v699, 0.0
      %v720 = vmax.f32 %v702, 0.0
      %v721 = vmax.f32 %v704, 0.0
      %v722 = vpack.c.bf16 %v706, %v706
      %v723 = vpack.c.bf16 %v707, %v707
      %v724 = vpack.c.bf16 %v708, %v708
      %v725 = vpack.c.bf16 %v709, %v709
      %v726 = vpack.c.bf16 %v710, %v710
      %v727 = vpack.c.bf16 %v711, %v711
      %v728 = vpack.c.bf16 %v712, %v712
      %v729 = vpack.c.bf16 %v713, %v713
      %v730 = vpack.c.bf16 %v714, %v714
      %v731 = vpack.c.bf16 %v715, %v715
      %v732 = vpack.c.bf16 %v716, %v716
      %v733 = vpack.c.bf16 %v717, %v717
      %v734 = vpack.c.bf16 %v718, %v718
      %v735 = vpack.c.bf16 %v719, %v719
      %v736 = vpack.c.bf16 %v720, %v720
      %v737 = vpack.c.bf16 %v721, %v721
      %738 = vst [vmem:[#allocation11] sm:$0xf] %v722
      %739 = vst [vmem:[#allocation11 + $0x4] sm:$0xf] %v723
      %740 = vst [vmem:[#allocation11 + $0x8] sm:$0xf] %v724
      %741 = vst [vmem:[#allocation11 + $0xc] sm:$0xf] %v725
      %742 = vst [vmem:[#allocation11 + $0x10] sm:$0xf] %v726
      %743 = vst [vmem:[#allocation11 + $0x14] sm:$0xf] %v727
      %744 = vst [vmem:[#allocation11 + $0x18] sm:$0xf] %v728
      %745 = vst [vmem:[#allocation11 + $0x1c] sm:$0xf] %v729
      %746 = vst [vmem:[#allocation11 + $0x20] sm:$0xf] %v730
      %747 = vst [vmem:[#allocation11 + $0x24] sm:$0xf] %v731
      %748 = vst [vmem:[#allocation11 + $0x28] sm:$0xf] %v732
      %749 = vst [vmem:[#allocation11 + $0x2c] sm:$0xf] %v733
      %750 = vst [vmem:[#allocation11 + $0x30] sm:$0xf] %v734
      %751 = vst [vmem:[#allocation11 + $0x34] sm:$0xf] %v735
      %752 = vst [vmem:[#allocation11 + $0x38] sm:$0xf] %v736
      %753 = vst [vmem:[#allocation11 + $0x3c] sm:$0xf] %v737
    $region45: #{tpu_custom_call.1} parent=1 // pred_fallthru
      _
    // Predicated region
    $region46: #{tpu_custom_call.1} parent=1 // pred_check
      _
    $region47: #{tpu_custom_call.1} parent=1 // pred_check_branch
      %755 = sbr.rel (0) target = $region49
    $region48: #{tpu_custom_call.1} parent=1 // pred_region
      %757 = vsyncadd [#allocation5], 0
      %s758 = sshll.u32 [#allocation11], 4
      %s759 = int_to_ptr.vmem [resolvable:$true] %s758
      %s760 = sshll.u32 %s5, 4
      %s761 = int_to_ptr.hbm [resolvable:$true] %s760
      %766 = dma.vmem_to_hbm [thread:$0]  %s759, 1024, %s761, [#allocation5], 64, 64, 4
    $region49: #{tpu_custom_call.1} parent=1 // pred_fallthru
      _
    // Predicated region
    $region50: #{tpu_custom_call.1} parent=1 // pred_check
      _
    $region51: #{tpu_custom_call.1} parent=1 // pred_check_branch
      %768 = sbr.rel (0) target = $region53
    $region52: #{tpu_custom_call.1} parent=1 // pred_region
      %770 = dma.done [#allocation5], 1024
    $region53: #{tpu_custom_call.1} parent=1 // pred_fallthru
      _
    %771 = vsyncpa [#allocation4], 1
    %772 = vsyncpa [#allocation7], 1
    %773 = vsyncpa [#allocation10], 1
    %774 = vsyncpa [#allocation5], 1

</llo_original>
